<compile_context>
chip_gen: v5e
topology: v5e:2x2
jax: 0.10.0
libtpu: 0.0.40
codegen_flags: <defaults>
</compile_context>

<pallas_src>
import functools

import jax
import jax.numpy as jnp
from jax.experimental import pallas as pl
from jax.experimental.pallas import tpu as pltpu
import numpy as np


def _round_up(x, m):
    return (x + m - 1) // m * m


def _gru_net_kernel(tmax_ref,                       # SMEM (1,) i32 scalar prefetch
                    len_ref, x_ref,
                    wi_ref, bi_ref, whh_ref, bhn_ref,
                    wavg_ref, wmax_ref, bout_ref,
                    out_ref,
                    gi_ref,                         # VMEM scratch
                    *, B, Hp, G3):
    """One batch-block of the full forward pass.

    len_ref  : (B, 1)        i32       valid lengths (clamped to T)
    x_ref    : (1, T*B, Ep)  f32/bf16  embeddings, time-major inside the block
    wi_ref   : (Ep, 3Hp)               input->hidden weights, gates [r|z|n] on lanes
    bi_ref   : (1, 3Hp)      f32       [b_ih_r+b_hh_r | b_ih_z+b_hh_z | b_ih_n]
    whh_ref  : (Hp, 3Hp)               hidden->hidden weights, gates fused on lanes
    bhn_ref  : (1, Hp)       f32       b_hh_n (stays inside the r* term)
    wavg/wmax: (Hp, Np)                output Linear split acting on avg / max pool
    bout_ref : (1, Np)       f32       bias; padded classes carry -1e30 (softmax mask)
    out_ref  : (B, Np)       f32       log-probabilities (lane-dense store)
    gi_ref   : (T*B, 3Hp)    f32       hoisted input projections
    """
    t_max = tmax_ref[0]                                   # scalar i32 from SMEM

    # ---- Hoisted input projection: ONE (T*B, Ep) x (Ep, 3Hp) MXU matmul with
    # gate biases folded in; stored to VMEM scratch for tile-aligned per-step loads.
    x = x_ref[0]                                                         # (T*B, Ep)
    gi_ref[...] = (jnp.dot(x, wi_ref[...], preferred_element_type=jnp.float32)
                   + bi_ref[...])                                        # (T*B, 3Hp) f32

    whh = whh_ref[...]                    # (Hp, 3Hp) RHS, invariant over all steps
    lengths = len_ref[...]                # (B, 1) i32
    bhn = jnp.broadcast_to(bhn_ref[...], (B, Hp))          # hoisted broadcast

    # TODO(synk): at production sizes keep `whh` resident in the MXU across steps
    # via pltpu.matmul_push_rhs / matmul_acc_lhs / matmul_pop (hold-RHS case).

    def step(t, carry):
        h, s, m = carry                                    # f32 vreg carries
        lo = pl.multiple_of(t * B, B)                      # sublane-tile aligned
        gi_t = gi_ref[pl.ds(lo, B), :]                     # (B, 3Hp)
        gh = jnp.dot(h.astype(whh.dtype), whh,
                     preferred_element_type=jnp.float32)   # one MXU push / step
        r = jax.nn.sigmoid(gi_t[:, 0:Hp] + gh[:, 0:Hp])
        z = jax.nn.sigmoid(gi_t[:, Hp:2 * Hp] + gh[:, Hp:2 * Hp])
        n = jnp.tanh(gi_t[:, 2 * Hp:3 * Hp] + r * (gh[:, 2 * Hp:3 * Hp] + bhn))
        h_new = n + z * (h - n)                            # == (1-z)*n + z*h
        valid = t < lengths                                # (B, 1) bool
        out_t = jnp.where(valid, h_new, 0.0)               # packed-seq: zeros past len
        h = jnp.where(valid, h_new, h)                     # hidden frozen past len
        return h, s + out_t, jnp.maximum(m, out_t)

    h0 = jnp.zeros((B, Hp), jnp.float32)
    s0 = jnp.zeros((B, Hp), jnp.float32)
    m0 = jnp.full((B, Hp), -jnp.inf, jnp.float32)
    _, s_pool, m_pool = jax.lax.fori_loop(0, t_max, step, (h0, s0, m0))

    # ---- Pooling over the pad_packed window [0, max(lengths)), output head,
    # log_softmax. (t_max == 0, i.e. an all-empty batch, is degenerate: the
    # divisor is guarded but max-pool stays -inf; reference is undefined there.)
    inv_t = 1.0 / jnp.maximum(t_max, 1).astype(jnp.float32)
    avg_pool = s_pool * inv_t                              # (B, Hp)
    wavg = wavg_ref[...]
    wmax = wmax_ref[...]
    logits = (jnp.dot(avg_pool.astype(wavg.dtype), wavg,
                      preferred_element_type=jnp.float32)
              + jnp.dot(m_pool.astype(wmax.dtype), wmax,
                        preferred_element_type=jnp.float32)
              + bout_ref[...])                             # (B, Np)
    mx = jnp.max(logits, axis=-1, keepdims=True)
    shifted = logits - mx
    out_ref[...] = shifted - jnp.log(jnp.sum(jnp.exp(shifted), axis=-1, keepdims=True))


def rnn_gru_forward(seq, lengths, params, *, matmul_dtype=jnp.float32, b_block=8):
    """seq: (T, B) int32 token ids, lengths: (B,) int32 valid lengths."""
    T, B = seq.shape
    E = params["emb"].shape[1]
    H = params["b_hh"].shape[0] // 3
    n_out = params["b_out"].shape[0]

    LANE, SUB = 128, 8
    Ep, Hp, Np = _round_up(E, LANE), _round_up(H, LANE), _round_up(n_out, LANE)
    G3 = 3 * Hp
    assert b_block % SUB == 0
    Bp = _round_up(B, b_block)
    nb = Bp // b_block

    # Clamp lengths to T (also guards the in-kernel dynamic gi slice).
    lengths = jnp.minimum(lengths.astype(jnp.int32), T)
    tmax = jnp.max(lengths).astype(jnp.int32).reshape(1)
    # Padded batch rows get length 1 so every intermediate stays finite; sliced off.
    len_p = jnp.pad(lengths, (0, Bp - B), constant_values=1).reshape(Bp, 1)

    # Embedding lookup (gather) in plain JAX.
    # TODO(synk): at production vocab/T, gather inside the kernel instead
    # (scalar-prefetch token ids + row-gather DMA from an HBM-resident table)
    # to avoid the (T,B,E) HBM materialize-then-reread round trip.
    embs = jnp.take(params["emb"], seq, axis=0).astype(jnp.float32)       # (T, B, E)
    embs = jnp.pad(embs, ((0, 0), (0, Bp - B), (0, Ep - E)))              # (T, Bp, Ep)
    # Re-layout so each batch block is one contiguous (T*b_block, Ep) slab
    # (keeps the kernel free of bf16 tile-crossing reshapes).
    x = embs.reshape(T, nb, b_block, Ep).transpose(1, 0, 2, 3)
    x = x.reshape(nb, T * b_block, Ep).astype(matmul_dtype)

    w_ih, w_hh = params["w_ih"], params["w_hh"]            # (3H, E), (3H, H)
    b_ih, b_hh = params["b_ih"], params["b_hh"]

    def pad2(a, r, c):
        return jnp.pad(a, ((0, r - a.shape[0]), (0, c - a.shape[1])))

    def pad1(v, n):
        return jnp.pad(v, (0, n - v.shape[0]))

    # Fused per-gate weight blocks, transposed for x @ W, gates [r|z|n] on lanes.
    wi = jnp.concatenate([pad2(w_ih[0:H].T, Ep, Hp),
                          pad2(w_ih[H:2 * H].T, Ep, Hp),
                          pad2(w_ih[2 * H:3 * H].T, Ep, Hp)], axis=1).astype(matmul_dtype)
    whh = jnp.concatenate([pad2(w_hh[0:H].T, Hp, Hp),
                           pad2(w_hh[H:2 * H].T, Hp, Hp),
                           pad2(w_hh[2 * H:3 * H].T, Hp, Hp)], axis=1).astype(matmul_dtype)
    bi = jnp.concatenate([pad1(b_ih[0:H] + b_hh[0:H], Hp),
                          pad1(b_ih[H:2 * H] + b_hh[H:2 * H], Hp),
                          pad1(b_ih[2 * H:3 * H], Hp)]).reshape(1, G3).astype(jnp.float32)
    bhn = pad1(b_hh[2 * H:3 * H], Hp).reshape(1, Hp).astype(jnp.float32)

    w_out = params["w_out"]                                # (n_out, 2H): [avg | max]
    wavg = pad2(w_out[:, 0:H].T, Hp, Np).astype(matmul_dtype)
    wmax = pad2(w_out[:, H:2 * H].T, Hp, Np).astype(matmul_dtype)
    # Padded logit columns get -1e30 so log_softmax ignores them.
    bout = jnp.full((Np,), -1e30, jnp.float32).at[:n_out].set(
        params["b_out"].astype(jnp.float32)).reshape(1, Np)

    kernel = functools.partial(_gru_net_kernel, B=b_block, Hp=Hp, G3=G3)

    # TODO(synk): at production T, stream the gi scratch over T-chunks
    # (pltpu.emit_pipeline or a T grid axis marked "arbitrary") instead of keeping
    # (T*B, 3H) resident -- this breaks first on v7x's 64 MiB VMEM.
    grid_spec = pltpu.PrefetchScalarGridSpec(
        num_scalar_prefetch=1,
        grid=(nb,),
        in_specs=[
            pl.BlockSpec((b_block, 1), lambda b, tm: (b, 0)),             # lengths
            pl.BlockSpec((1, T * b_block, Ep), lambda b, tm: (b, 0, 0)),  # x
            pl.BlockSpec((Ep, G3), lambda b, tm: (0, 0)),                 # wi fused
            pl.BlockSpec((1, G3), lambda b, tm: (0, 0)),                  # bi fused
            pl.BlockSpec((Hp, G3), lambda b, tm: (0, 0)),                 # whh fused
            pl.BlockSpec((1, Hp), lambda b, tm: (0, 0)),                  # b_hh_n
            pl.BlockSpec((Hp, Np), lambda b, tm: (0, 0)),                 # w_out (avg)
            pl.BlockSpec((Hp, Np), lambda b, tm: (0, 0)),                 # w_out (max)
            pl.BlockSpec((1, Np), lambda b, tm: (0, 0)),                  # b_out
        ],
        out_specs=pl.BlockSpec((b_block, Np), lambda b, tm: (b, 0)),
        scratch_shapes=[pltpu.VMEM((T * b_block, G3), jnp.float32)],
    )

    out = pl.pallas_call(
        kernel,
        out_shape=jax.ShapeDtypeStruct((Bp, Np), jnp.float32),
        grid_spec=grid_spec,
        compiler_params=pltpu.CompilerParams(
            dimension_semantics=("parallel",),
            vmem_limit_bytes=32 * 1024 * 1024),
    )(tmax, len_p, x, wi, bi, whh, bhn, wavg, wmax, bout)

    return out[:B, :n_out]


def rnn_gru_reference(seq, lengths, params):
    """Pure-JAX reference matching PyTorch pack/pad + pooling semantics."""
    T, B = seq.shape
    H = params["b_hh"].shape[0] // 3
    embs = jnp.take(params["emb"], seq, axis=0).astype(jnp.float32)
    wih_t = params["w_ih"].T
    whh_t = params["w_hh"].T
    bih = params["b_ih"]
    bhh = params["b_hh"]

    h = jnp.zeros((B, H), jnp.float32)
    outs = []
    for t in range(T):
        x_t = embs[t]
        gi = x_t @ wih_t + bih
        gh = h @ whh_t + bhh
        r = jax.nn.sigmoid(gi[:, :H] + gh[:, :H])
        z = jax.nn.sigmoid(gi[:, H:2 * H] + gh[:, H:2 * H])
        n = jnp.tanh(gi[:, 2 * H:] + r * gh[:, 2 * H:])
        h_new = (1.0 - z) * n + z * h
        valid = (t < lengths)[:, None]
        outs.append(jnp.where(valid, h_new, 0.0))
        h = jnp.where(valid, h_new, h)
    gru_out = jnp.stack(outs, axis=0)                 # (T, B, H)
    t_max = int(np.max(np.asarray(lengths)))
    gru_out = gru_out[:t_max]                         # pad_packed pads to max(lengths)
    avg_pool = jnp.mean(gru_out, axis=0)
    max_pool = jnp.max(gru_out, axis=0)
    feat = jnp.concatenate([avg_pool, max_pool], axis=1)
    logits = feat @ params["w_out"].T + params["b_out"]
    return jax.nn.log_softmax(logits, axis=-1)


def init_params(key, vocab_size, embedding_dim, n_hidden, n_out):
    ks = jax.random.split(key, 7)
    kgru = 1.0 / np.sqrt(n_hidden)
    kout = 1.0 / np.sqrt(2 * n_hidden)
    return {
        "emb": jax.random.normal(ks[0], (vocab_size, embedding_dim), jnp.float32),
        "w_ih": jax.random.uniform(ks[1], (3 * n_hidden, embedding_dim), jnp.float32, -kgru, kgru),
        "w_hh": jax.random.uniform(ks[2], (3 * n_hidden, n_hidden), jnp.float32, -kgru, kgru),
        "b_ih": jax.random.uniform(ks[3], (3 * n_hidden,), jnp.float32, -kgru, kgru),
        "b_hh": jax.random.uniform(ks[4], (3 * n_hidden,), jnp.float32, -kgru, kgru),
        "w_out": jax.random.uniform(ks[5], (n_out, 2 * n_hidden), jnp.float32, -kout, kout),
        "b_out": jax.random.uniform(ks[6], (n_out,), jnp.float32, -kout, kout),
    }


if __name__ == "__main__":
    vocab_size, embedding_dim, n_hidden, n_out = 50, 32, 32, 8
    T, B = 8, 2

    key = jax.random.PRNGKey(0)
    kp, ks = jax.random.split(key)
    params = init_params(kp, vocab_size, embedding_dim, n_hidden, n_out)

    seq = jax.random.randint(ks, (T, B), 0, vocab_size, dtype=jnp.int32)
    lengths = jnp.array([8, 5], dtype=jnp.int32)
    # zero out padded positions like a real padded batch (ids past length -> pad id 0)
    t_ids = jnp.arange(T, dtype=jnp.int32)[:, None]
    seq = jnp.where(t_ids < lengths[None, :], seq, 0)

    ref = rnn_gru_reference(seq, lengths, params)

    # f32 MXU path: exact check.
    out_f32 = jax.block_until_ready(rnn_gru_forward(seq, lengths, params))
    np.testing.assert_allclose(np.asarray(out_f32), np.asarray(ref), rtol=2e-4, atol=2e-4)

    # bf16 MXU path (v6e/v7x recommendation): bf16 matmul inputs, f32
    # accumulation / carries / elementwise math (v5e-safe) -> looser tolerance.
    out_bf16 = jax.block_until_ready(
        rnn_gru_forward(seq, lengths, params, matmul_dtype=jnp.bfloat16))
    np.testing.assert_allclose(np.asarray(out_bf16), np.asarray(ref), rtol=1e-1, atol=1e-1)

    print("KERNEL_OK")
</pallas_src>

<mosaic_0001>
module attributes {stable_mosaic.version = 11 : i64} {
  func.func @_gru_net_kernel(%arg0: i32, %arg1: memref<1xi32, #tpu.memory_space<smem>>, %arg2: memref<8x1xi32, #tpu.memory_space<vmem>>, %arg3: memref<1x64x128xf32, #tpu.memory_space<vmem>>, %arg4: memref<128x384xf32, #tpu.memory_space<vmem>>, %arg5: memref<1x384xf32, #tpu.memory_space<vmem>>, %arg6: memref<128x384xf32, #tpu.memory_space<vmem>>, %arg7: memref<1x128xf32, #tpu.memory_space<vmem>>, %arg8: memref<128x128xf32, #tpu.memory_space<vmem>>, %arg9: memref<128x128xf32, #tpu.memory_space<vmem>>, %arg10: memref<1x128xf32, #tpu.memory_space<vmem>>, %arg11: memref<8x128xf32, #tpu.memory_space<vmem>>, %arg12: memref<64x384xf32, #tpu.memory_space<vmem>>) attributes {dimension_semantics = [#tpu.dimension_semantics<parallel>], iteration_bounds = array<i64: 1>, scalar_prefetch = 1 : i64, scratch_operands = 1 : i64, tpu.core_type = #tpu.core_type<tc>, window_params = [{transform_indices = @transform_0, window_bounds = array<i64: 8, 1>}, {transform_indices = @transform_1, window_bounds = array<i64: 1, 64, 128>}, {pipeline_mode = #tpu.pipeline_mode<synchronous>, transform_indices = @transform_2, window_bounds = array<i64: 128, 384>}, {pipeline_mode = #tpu.pipeline_mode<synchronous>, transform_indices = @transform_3, window_bounds = array<i64: 1, 384>}, {pipeline_mode = #tpu.pipeline_mode<synchronous>, transform_indices = @transform_4, window_bounds = array<i64: 128, 384>}, {pipeline_mode = #tpu.pipeline_mode<synchronous>, transform_indices = @transform_5, window_bounds = array<i64: 1, 128>}, {pipeline_mode = #tpu.pipeline_mode<synchronous>, transform_indices = @transform_6, window_bounds = array<i64: 128, 128>}, {pipeline_mode = #tpu.pipeline_mode<synchronous>, transform_indices = @transform_7, window_bounds = array<i64: 128, 128>}, {pipeline_mode = #tpu.pipeline_mode<synchronous>, transform_indices = @transform_8, window_bounds = array<i64: 1, 128>}, {transform_indices = @transform_9, window_bounds = array<i64: 8, 128>}]} {
    %c0 = arith.constant 0 : index
    %0 = memref.load %arg1[%c0] : memref<1xi32, #tpu.memory_space<smem>>
    %c0_0 = arith.constant 0 : index
    %c0_1 = arith.constant 0 : index
    %c0_2 = arith.constant 0 : index
    %1 = vector.load %arg3[%c0_0, %c0_1, %c0_2] : memref<1x64x128xf32, #tpu.memory_space<vmem>>, vector<1x64x128xf32>
    %2 = vector.shape_cast %1 : vector<1x64x128xf32> to vector<64x128xf32>
    %c0_3 = arith.constant 0 : index
    %c0_4 = arith.constant 0 : index
    %3 = vector.load %arg4[%c0_3, %c0_4] : memref<128x384xf32, #tpu.memory_space<vmem>>, vector<128x384xf32>
    %cst = arith.constant dense<0.000000e+00> : vector<64x384xf32>
    %4 = tpu.matmul %2, %3, %cst {dimension_numbers = #tpu.dot_dimension_numbers<[1], [0], [0], [1], [0, 0, 1, 1], [], []>} : vector<64x128xf32>, vector<128x384xf32>, vector<64x384xf32> -> vector<64x384xf32>
    %c0_5 = arith.constant 0 : index
    %c0_6 = arith.constant 0 : index
    %5 = vector.load %arg5[%c0_5, %c0_6] : memref<1x384xf32, #tpu.memory_space<vmem>>, vector<1x384xf32>
    %6 = vector.broadcast %5 : vector<1x384xf32> to vector<64x384xf32>
    %7 = arith.addf %4, %6 : vector<64x384xf32>
    %c0_7 = arith.constant 0 : index
    %c0_8 = arith.constant 0 : index
    %8 = vector.load %arg12[%c0_7, %c0_8] : memref<64x384xf32, #tpu.memory_space<vmem>>, vector<64x384xf32>
    tpu.vector_store %arg12[%c0_7, %c0_8], %7 {strides = array<i32>} : memref<64x384xf32, #tpu.memory_space<vmem>>, vector<64x384xf32>,
    %c0_9 = arith.constant 0 : index
    %c0_10 = arith.constant 0 : index
    %9 = vector.load %arg6[%c0_9, %c0_10] : memref<128x384xf32, #tpu.memory_space<vmem>>, vector<128x384xf32>
    %c0_11 = arith.constant 0 : index
    %c0_12 = arith.constant 0 : index
    %10 = vector.load %arg2[%c0_11, %c0_12] : memref<8x1xi32, #tpu.memory_space<vmem>>, vector<8x1xi32>
    %c0_13 = arith.constant 0 : index
    %c0_14 = arith.constant 0 : index
    %11 = vector.load %arg7[%c0_13, %c0_14] : memref<1x128xf32, #tpu.memory_space<vmem>>, vector<1x128xf32>
    %12 = vector.shape_cast %11 : vector<1x128xf32> to vector<1x128xf32>
    %13 = vector.broadcast %12 : vector<1x128xf32> to vector<8x128xf32>
    %cst_15 = arith.constant 0.000000e+00 : f32
    %14 = vector.broadcast %cst_15 : f32 to vector<8x128xf32>
    %cst_16 = arith.constant 0.000000e+00 : f32
    %15 = vector.broadcast %cst_16 : f32 to vector<8x128xf32>
    %cst_17 = arith.constant 0xFF800000 : f32
    %16 = vector.broadcast %cst_17 : f32 to vector<8x128xf32>
    %c0_i32 = arith.constant 0 : i32
    %17 = arith.subi %0, %c0_i32 : i32
    %18 = arith.addi %c0_i32, %17 : i32
    %c1_i32 = arith.constant 1 : i32
    %19:3 = scf.for %arg13 = %c0_i32 to %18 step %c1_i32 iter_args(%arg14 = %14, %arg15 = %15, %arg16 = %16) -> (vector<8x128xf32>, vector<8x128xf32>, vector<8x128xf32>)  : i32 {
      %c8_i32 = arith.constant 8 : i32
      %44 = arith.muli %arg13, %c8_i32 : i32
      %45 = tpu.assume_multiple %44, 8 : i32
      %46 = arith.index_cast %45 : i32 to index
      %c0_32 = arith.constant 0 : index
      %47 = vector.load %arg12[%46, %c0_32] : memref<64x384xf32, #tpu.memory_space<vmem>>, vector<8x384xf32>
      %cst_33 = arith.constant dense<0.000000e+00> : vector<8x384xf32>
      %48 = tpu.matmul %arg14, %9, %cst_33 {dimension_numbers = #tpu.dot_dimension_numbers<[1], [0], [0], [1], [0, 0, 1, 1], [], []>} : vector<8x128xf32>, vector<128x384xf32>, vector<8x384xf32> -> vector<8x384xf32>
      %49 = vector.extract_strided_slice %47 {offsets = [0, 0], sizes = [8, 128], strides = [1, 1]} : vector<8x384xf32> to vector<8x128xf32>
      %50 = vector.extract_strided_slice %48 {offsets = [0, 0], sizes = [8, 128], strides = [1, 1]} : vector<8x384xf32> to vector<8x128xf32>
      %51 = arith.addf %49, %50 : vector<8x128xf32>
      %52 = arith.negf %51 : vector<8x128xf32>
      %53 = math.exp %52 : vector<8x128xf32>
      %cst_34 = arith.constant 1.000000e+00 : f32
      %54 = vector.broadcast %cst_34 : f32 to vector<8x128xf32>
      %55 = arith.addf %54, %53 : vector<8x128xf32>
      %56 = arith.divf %54, %55 : vector<8x128xf32>
      %57 = vector.extract_strided_slice %47 {offsets = [0, 128], sizes = [8, 128], strides = [1, 1]} : vector<8x384xf32> to vector<8x128xf32>
      %58 = vector.extract_strided_slice %48 {offsets = [0, 128], sizes = [8, 128], strides = [1, 1]} : vector<8x384xf32> to vector<8x128xf32>
      %59 = arith.addf %57, %58 : vector<8x128xf32>
      %60 = arith.negf %59 : vector<8x128xf32>
      %61 = math.exp %60 : vector<8x128xf32>
      %cst_35 = arith.constant 1.000000e+00 : f32
      %62 = vector.broadcast %cst_35 : f32 to vector<8x128xf32>
      %63 = arith.addf %62, %61 : vector<8x128xf32>
      %64 = arith.divf %62, %63 : vector<8x128xf32>
      %65 = vector.extract_strided_slice %47 {offsets = [0, 256], sizes = [8, 128], strides = [1, 1]} : vector<8x384xf32> to vector<8x128xf32>
      %66 = vector.extract_strided_slice %48 {offsets = [0, 256], sizes = [8, 128], strides = [1, 1]} : vector<8x384xf32> to vector<8x128xf32>
      %67 = arith.addf %66, %13 : vector<8x128xf32>
      %68 = arith.mulf %56, %67 : vector<8x128xf32>
      %69 = arith.addf %65, %68 : vector<8x128xf32>
      %70 = math.tanh %69 : vector<8x128xf32>
      %71 = arith.subf %arg14, %70 : vector<8x128xf32>
      %72 = arith.mulf %64, %71 : vector<8x128xf32>
      %73 = arith.addf %70, %72 : vector<8x128xf32>
      %74 = vector.broadcast %arg13 : i32 to vector<8x1xi32>
      %75 = arith.cmpi slt, %74, %10 : vector<8x1xi32>
      %cst_36 = arith.constant 0.000000e+00 : f32
      %76 = vector.shape_cast %75 : vector<8x1xi1> to vector<8x1xi1>
      %77 = vector.broadcast %76 : vector<8x1xi1> to vector<8x128xi1>
      %78 = vector.broadcast %cst_36 : f32 to vector<8x128xf32>
      %79 = arith.select %77, %73, %78 : vector<8x128xi1>, vector<8x128xf32>
      %80 = vector.shape_cast %75 : vector<8x1xi1> to vector<8x1xi1>
      %81 = vector.broadcast %80 : vector<8x1xi1> to vector<8x128xi1>
      %82 = arith.select %81, %73, %arg14 : vector<8x128xi1>, vector<8x128xf32>
      %83 = arith.addf %arg15, %79 : vector<8x128xf32>
      %84 = arith.maximumf %arg16, %79 : vector<8x128xf32>
      scf.yield %82, %83, %84 : vector<8x128xf32>, vector<8x128xf32>, vector<8x128xf32>
    }
    %c1_i32_18 = arith.constant 1 : i32
    %20 = arith.maxsi %0, %c1_i32_18 : i32
    %21 = arith.sitofp %20 : i32 to f32
    %cst_19 = arith.constant 1.000000e+00 : f32
    %22 = arith.divf %cst_19, %21 : f32
    %23 = vector.broadcast %22 : f32 to vector<8x128xf32>
    %24 = arith.mulf %19#1, %23 : vector<8x128xf32>
    %c0_20 = arith.constant 0 : index
    %c0_21 = arith.constant 0 : index
    %25 = vector.load %arg8[%c0_20, %c0_21] : memref<128x128xf32, #tpu.memory_space<vmem>>, vector<128x128xf32>
    %c0_22 = arith.constant 0 : index
    %c0_23 = arith.constant 0 : index
    %26 = vector.load %arg9[%c0_22, %c0_23] : memref<128x128xf32, #tpu.memory_space<vmem>>, vector<128x128xf32>
    %cst_24 = arith.constant dense<0.000000e+00> : vector<8x128xf32>
    %27 = tpu.matmul %24, %25, %cst_24 {dimension_numbers = #tpu.dot_dimension_numbers<[1], [0], [0], [1], [0, 0, 1, 1], [], []>} : vector<8x128xf32>, vector<128x128xf32>, vector<8x128xf32> -> vector<8x128xf32>
    %cst_25 = arith.constant dense<0.000000e+00> : vector<8x128xf32>
    %28 = tpu.matmul %19#2, %26, %cst_25 {dimension_numbers = #tpu.dot_dimension_numbers<[1], [0], [0], [1], [0, 0, 1, 1], [], []>} : vector<8x128xf32>, vector<128x128xf32>, vector<8x128xf32> -> vector<8x128xf32>
    %29 = arith.addf %27, %28 : vector<8x128xf32>
    %c0_26 = arith.constant 0 : index
    %c0_27 = arith.constant 0 : index
    %30 = vector.load %arg10[%c0_26, %c0_27] : memref<1x128xf32, #tpu.memory_space<vmem>>, vector<1x128xf32>
    %31 = vector.broadcast %30 : vector<1x128xf32> to vector<8x128xf32>
    %32 = arith.addf %29, %31 : vector<8x128xf32>
    %cst_28 = arith.constant dense<0xFF800000> : vector<8xf32>
    %33 = vector.multi_reduction <maximumf>, %32, %cst_28 [1] : vector<8x128xf32> to vector<8xf32>
    %34 = vector.shape_cast %33 : vector<8xf32> to vector<8x1xf32>
    %35 = vector.broadcast %34 : vector<8x1xf32> to vector<8x128xf32>
    %36 = arith.subf %32, %35 : vector<8x128xf32>
    %37 = math.exp %36 : vector<8x128xf32>
    %cst_29 = arith.constant dense<0.000000e+00> : vector<8xf32>
    %38 = vector.multi_reduction <add>, %37, %cst_29 [1] : vector<8x128xf32> to vector<8xf32>
    %39 = vector.shape_cast %38 : vector<8xf32> to vector<8x1xf32>
    %40 = math.log %39 : vector<8x1xf32>
    %41 = vector.broadcast %40 : vector<8x1xf32> to vector<8x128xf32>
    %42 = arith.subf %36, %41 : vector<8x128xf32>
    %c0_30 = arith.constant 0 : index
    %c0_31 = arith.constant 0 : index
    %43 = vector.load %arg11[%c0_30, %c0_31] : memref<8x128xf32, #tpu.memory_space<vmem>>, vector<8x128xf32>
    tpu.vector_store %arg11[%c0_30, %c0_31], %42 {strides = array<i32>} : memref<8x128xf32, #tpu.memory_space<vmem>>, vector<8x128xf32>,
    return
  }
  func.func @transform_0(%arg0: i32, %arg1: memref<1xi32, #tpu.memory_space<smem>>) -> (i32, i32) {
    %c0_i32 = arith.constant 0 : i32
    %c0_i32_0 = arith.constant 0 : i32
    return %arg0, %c0_i32 : i32, i32
  }
  func.func @transform_1(%arg0: i32, %arg1: memref<1xi32, #tpu.memory_space<smem>>) -> (i32, i32, i32) {
    %c0_i32 = arith.constant 0 : i32
    %c0_i32_0 = arith.constant 0 : i32
    %c0_i32_1 = arith.constant 0 : i32
    return %arg0, %c0_i32, %c0_i32_0 : i32, i32, i32
  }
  func.func @transform_2(%arg0: i32, %arg1: memref<1xi32, #tpu.memory_space<smem>>) -> (i32, i32) {
    %c0_i32 = arith.constant 0 : i32
    %c0_i32_0 = arith.constant 0 : i32
    %c0_i32_1 = arith.constant 0 : i32
    return %c0_i32, %c0_i32_0 : i32, i32
  }
  func.func @transform_3(%arg0: i32, %arg1: memref<1xi32, #tpu.memory_space<smem>>) -> (i32, i32) {
    %c0_i32 = arith.constant 0 : i32
    %c0_i32_0 = arith.constant 0 : i32
    %c0_i32_1 = arith.constant 0 : i32
    return %c0_i32, %c0_i32_0 : i32, i32
  }
  func.func @transform_4(%arg0: i32, %arg1: memref<1xi32, #tpu.memory_space<smem>>) -> (i32, i32) {
    %c0_i32 = arith.constant 0 : i32
    %c0_i32_0 = arith.constant 0 : i32
    %c0_i32_1 = arith.constant 0 : i32
    return %c0_i32, %c0_i32_0 : i32, i32
  }
  func.func @transform_5(%arg0: i32, %arg1: memref<1xi32, #tpu.memory_space<smem>>) -> (i32, i32) {
    %c0_i32 = arith.constant 0 : i32
    %c0_i32_0 = arith.constant 0 : i32
    %c0_i32_1 = arith.constant 0 : i32
    return %c0_i32, %c0_i32_0 : i32, i32
  }
  func.func @transform_6(%arg0: i32, %arg1: memref<1xi32, #tpu.memory_space<smem>>) -> (i32, i32) {
    %c0_i32 = arith.constant 0 : i32
    %c0_i32_0 = arith.constant 0 : i32
    %c0_i32_1 = arith.constant 0 : i32
    return %c0_i32, %c0_i32_0 : i32, i32
  }
  func.func @transform_7(%arg0: i32, %arg1: memref<1xi32, #tpu.memory_space<smem>>) -> (i32, i32) {
    %c0_i32 = arith.constant 0 : i32
    %c0_i32_0 = arith.constant 0 : i32
    %c0_i32_1 = arith.constant 0 : i32
    return %c0_i32, %c0_i32_0 : i32, i32
  }
  func.func @transform_8(%arg0: i32, %arg1: memref<1xi32, #tpu.memory_space<smem>>) -> (i32, i32) {
    %c0_i32 = arith.constant 0 : i32
    %c0_i32_0 = arith.constant 0 : i32
    %c0_i32_1 = arith.constant 0 : i32
    return %c0_i32, %c0_i32_0 : i32, i32
  }
  func.func @transform_9(%arg0: i32, %arg1: memref<1xi32, #tpu.memory_space<smem>>) -> (i32, i32) {
    %c0_i32 = arith.constant 0 : i32
    %c0_i32_0 = arith.constant 0 : i32
    return %arg0, %c0_i32 : i32, i32
  }
}

</mosaic_0001>

<llo_original>
// kernel: tpu_custom_call.1
$region0: #{tpu_custom_call.1}
  #allocation0 [shape = 'u32[]', space=smem, size = 0x4, offset = 0x4, fixed_abs, tag = 'smem constant byte address 0x4 - core index']
  #allocation1 [shape = 'u32[72,128]{1,0:T(1,128)}', space=vmem, size = 0x9000, scoped, tag = 'internal scratch']
  #allocation2 [shape = 'f32[64,384]{1,0:T(8,128)}', space=vmem, size = 0x18000, scoped, tag = 'scratch operand']
  #allocation3 [shape = 's32[1]{0}', space=sflag, size = 0x4, scoped, tag = 'scoped memory for tpu_custom_call.1']
  #allocation4 [shape = 's32[1]{0:T(128)S(6)}', space=smem, size = 0x200, scoped, tag = 'prefetched SMEM operand 0']
  %s0 = inlined_call_operand.<no memory space> [shape: s32[1], index: 0, kind: input, shape index: {}]
  %s1 = inlined_call_operand.vmem [shape: s32[8,1], index: 1, kind: input, shape index: {}]
  %s2 = inlined_call_operand.hbm [shape: f32[1,64,128], index: 2, kind: input, shape index: {}]
  %s3 = inlined_call_operand.hbm [shape: f32[128,384], index: 3, kind: input, shape index: {}]
  %s4 = inlined_call_operand.vmem [shape: f32[1,384], index: 4, kind: input, shape index: {}]
  %s5 = inlined_call_operand.hbm [shape: f32[128,384], index: 5, kind: input, shape index: {}]
  %s6 = inlined_call_operand.vmem [shape: f32[1,128], index: 6, kind: input, shape index: {}]
  %s7 = inlined_call_operand.hbm [shape: f32[128,128], index: 7, kind: input, shape index: {}]
  %s8 = inlined_call_operand.hbm [shape: f32[128,128], index: 8, kind: input, shape index: {}]
  %s9 = inlined_call_operand.vmem [shape: f32[1,128], index: 9, kind: input, shape index: {}]
  %s10 = inlined_call_operand.hbm [shape: f32[8,128], index: 10, kind: output, shape index: {}]
  %s11 = sld [smem:[#allocation0]]
  $region73: #{tpu_custom_call.1} parent=0
    _
  %s13 = ssub.s32 1, %s11
  %s14 = scalar_select 0, %s13, %s11
  %15 = sst [smem:[#allocation4]] %s0
  $region1: #{tpu_custom_call.1} parent=0
    #allocation5 [shape = 'u8[32768]{0}', space=vmem, size = 0x8000, scoped, tag = 'input window, operand 2, single buffered']
    #allocation6 [shape = 's32[1]{0}', space=sflag, size = 0x4, scoped, tag = 'scoped memory for tpu_custom_call.1']
    #allocation7 [shape = 's32[1]{0}', space=sflag, size = 0x4, scoped, tag = 'scoped memory for tpu_custom_call.1']
    #allocation8 [shape = 'u8[196608]{0}', space=vmem, size = 0x30000, scoped, tag = 'input window, operand 3, single buffered']
    #allocation9 [shape = 's32[1]{0}', space=sflag, size = 0x4, scoped, tag = 'scoped memory for tpu_custom_call.1']
    #allocation10 [shape = 'u8[196608]{0}', space=vmem, size = 0x30000, scoped, tag = 'input window, operand 5, single buffered']
    #allocation11 [shape = 'u8[65536]{0}', space=vmem, size = 0x10000, scoped, tag = 'input window, operand 7, single buffered']
    #allocation12 [shape = 's32[1]{0}', space=sflag, size = 0x4, scoped, tag = 'scoped memory for tpu_custom_call.1']
    #allocation13 [shape = 'u8[65536]{0}', space=vmem, size = 0x10000, scoped, tag = 'input window, operand 8, single buffered']
    #allocation14 [shape = 'u8[4096]{0}', space=vmem, size = 0x1000, scoped, tag = 'output window, operand 0, single buffered']
    %16 = vsyncpa [#allocation6], 0
    %17 = vsyncpa [#allocation9], 0
    %18 = vsyncpa [#allocation12], 0
    %19 = vsyncpa [#allocation7], 0
    // Predicated region
    $region2: #{tpu_custom_call.1} parent=1 // pred_check
      _
    $region3: #{tpu_custom_call.1} parent=1 // pred_check_branch
      %21 = sbr.rel (0) target = $region5
    $region4: #{tpu_custom_call.1} parent=1 // pred_region
      _
    $region5: #{tpu_custom_call.1} parent=1 // pred_fallthru
      _
    // Predicated region
    $region6: #{tpu_custom_call.1} parent=1 // pred_check
      _
    $region7: #{tpu_custom_call.1} parent=1 // pred_check_branch
      %23 = sbr.rel (0) target = $region9
    $region8: #{tpu_custom_call.1} parent=1 // pred_region
      %25 = vsyncadd [#allocation6], 0
      %s26 = sshll.u32 %s2, 4
      %s27 = int_to_ptr.hbm [resolvable:$true] %s26
      %s28 = sshll.u32 [#allocation5], 4
      %s29 = int_to_ptr.vmem [resolvable:$true] %s28
      %34 = dma.hbm_to_vmem [thread:$0]  %s27, 1024, %s29, [#allocation6], 128, 128, 8
    $region9: #{tpu_custom_call.1} parent=1 // pred_fallthru
      _
    // Predicated region
    $region10: #{tpu_custom_call.1} parent=1 // pred_check
      _
    $region11: #{tpu_custom_call.1} parent=1 // pred_check_branch
      %36 = sbr.rel (0) target = $region13
    $region12: #{tpu_custom_call.1} parent=1 // pred_region
      %38 = vsyncadd [#allocation9], 0
      %s39 = sshll.u32 %s3, 4
      %s40 = int_to_ptr.hbm [resolvable:$true] %s39
      %s41 = sshll.u32 [#allocation8], 4
      %s42 = int_to_ptr.vmem [resolvable:$true] %s41
      %47 = dma.hbm_to_vmem [thread:$0]  %s40, 6144, %s42, [#allocation9], 384, 384, 24
    $region13: #{tpu_custom_call.1} parent=1 // pred_fallthru
      _
    // Predicated region
    $region14: #{tpu_custom_call.1} parent=1 // pred_check
      _
    $region15: #{tpu_custom_call.1} parent=1 // pred_check_branch
      %49 = sbr.rel (0) target = $region17
    $region16: #{tpu_custom_call.1} parent=1 // pred_region
      _
    $region17: #{tpu_custom_call.1} parent=1 // pred_fallthru
      _
    // Predicated region
    $region18: #{tpu_custom_call.1} parent=1 // pred_check
      _
    $region19: #{tpu_custom_call.1} parent=1 // pred_check_branch
      %51 = sbr.rel (0) target = $region21
    $region20: #{tpu_custom_call.1} parent=1 // pred_region
      %53 = vsyncadd [#allocation9], 0
      %s54 = sshll.u32 %s5, 4
      %s55 = int_to_ptr.hbm [resolvable:$true] %s54
      %s56 = sshll.u32 [#allocation10], 4
      %s57 = int_to_ptr.vmem [resolvable:$true] %s56
      %62 = dma.hbm_to_vmem [thread:$0]  %s55, 6144, %s57, [#allocation9], 384, 384, 24
    $region21: #{tpu_custom_call.1} parent=1 // pred_fallthru
      _
    // Predicated region
    $region22: #{tpu_custom_call.1} parent=1 // pred_check
      _
    $region23: #{tpu_custom_call.1} parent=1 // pred_check_branch
      %64 = sbr.rel (0) target = $region25
    $region24: #{tpu_custom_call.1} parent=1 // pred_region
      _
    $region25: #{tpu_custom_call.1} parent=1 // pred_fallthru
      _
    // Predicated region
    $region26: #{tpu_custom_call.1} parent=1 // pred_check
      _
    $region27: #{tpu_custom_call.1} parent=1 // pred_check_branch
      %66 = sbr.rel (0) target = $region29
    $region28: #{tpu_custom_call.1} parent=1 // pred_region
      %68 = vsyncadd [#allocation12], 0
      %s69 = sshll.u32 %s7, 4
      %s70 = int_to_ptr.hbm [resolvable:$true] %s69
      %s71 = sshll.u32 [#allocation11], 4
      %s72 = int_to_ptr.vmem [resolvable:$true] %s71
      %77 = dma.hbm_to_vmem [thread:$0]  %s70, 2048, %s72, [#allocation12], 128, 128, 8
    $region29: #{tpu_custom_call.1} parent=1 // pred_fallthru
      _
    // Predicated region
    $region30: #{tpu_custom_call.1} parent=1 // pred_check
      _
    $region31: #{tpu_custom_call.1} parent=1 // pred_check_branch
      %79 = sbr.rel (0) target = $region33
    $region32: #{tpu_custom_call.1} parent=1 // pred_region
      %81 = vsyncadd [#allocation12], 0
      %s82 = sshll.u32 %s8, 4
      %s83 = int_to_ptr.hbm [resolvable:$true] %s82
      %s84 = sshll.u32 [#allocation13], 4
      %s85 = int_to_ptr.vmem [resolvable:$true] %s84
      %90 = dma.hbm_to_vmem [thread:$0]  %s83, 2048, %s85, [#allocation12], 128, 128, 8
    $region33: #{tpu_custom_call.1} parent=1 // pred_fallthru
      _
    // Predicated region
    $region34: #{tpu_custom_call.1} parent=1 // pred_check
      _
    $region35: #{tpu_custom_call.1} parent=1 // pred_check_branch
      %92 = sbr.rel (0) target = $region37
    $region36: #{tpu_custom_call.1} parent=1 // pred_region
      _
    $region37: #{tpu_custom_call.1} parent=1 // pred_fallthru
      _
    // Predicated region
    $region38: #{tpu_custom_call.1} parent=1 // pred_check
      _
    $region39: #{tpu_custom_call.1} parent=1 // pred_check_branch
      %94 = sbr.rel (0) target = $region41
    $region40: #{tpu_custom_call.1} parent=1 // pred_region
      %96 = dma.done [#allocation6], 1024
    $region41: #{tpu_custom_call.1} parent=1 // pred_fallthru
      _
    // Predicated region
    $region42: #{tpu_custom_call.1} parent=1 // pred_check
      _
    $region43: #{tpu_custom_call.1} parent=1 // pred_check_branch
      %98 = sbr.rel (0) target = $region45
    $region44: #{tpu_custom_call.1} parent=1 // pred_region
      %100 = dma.done [#allocation9], 6144
    $region45: #{tpu_custom_call.1} parent=1 // pred_fallthru
      _
    // Predicated region
    $region46: #{tpu_custom_call.1} parent=1 // pred_check
      _
    $region47: #{tpu_custom_call.1} parent=1 // pred_check_branch
      %102 = sbr.rel (0) target = $region49
    $region48: #{tpu_custom_call.1} parent=1 // pred_region
      %104 = dma.done [#allocation9], 6144
    $region49: #{tpu_custom_call.1} parent=1 // pred_fallthru
      _
    // Predicated region
    $region50: #{tpu_custom_call.1} parent=1 // pred_check
      _
    $region51: #{tpu_custom_call.1} parent=1 // pred_check_branch
      %106 = sbr.rel (0) target = $region53
    $region52: #{tpu_custom_call.1} parent=1 // pred_region
      %108 = dma.done [#allocation12], 2048
    $region53: #{tpu_custom_call.1} parent=1 // pred_fallthru
      _
    // Predicated region
    $region54: #{tpu_custom_call.1} parent=1 // pred_check
      _
    $region55: #{tpu_custom_call.1} parent=1 // pred_check_branch
      %110 = sbr.rel (0) target = $region57
    $region56: #{tpu_custom_call.1} parent=1 // pred_region
      %112 = dma.done [#allocation12], 2048
    $region57: #{tpu_custom_call.1} parent=1 // pred_fallthru
      _
    %s113 = sld [smem:[#allocation4]]
    %v114 = vld [vmem:[#allocation5] sm:$0xff]
    %v115 = vld [vmem:[#allocation5 + $0x8] sm:$0xff]
    %v116 = vld [vmem:[#allocation5 + $0x10] sm:$0xff]
    %v117 = vld [vmem:[#allocation5 + $0x18] sm:$0xff]
    %v118 = vld [vmem:[#allocation5 + $0x20] sm:$0xff]
    %v119 = vld [vmem:[#allocation5 + $0x28] sm:$0xff]
    %v120 = vld [vmem:[#allocation5 + $0x30] sm:$0xff]
    %v121 = vld [vmem:[#allocation5 + $0x38] sm:$0xff]
    %v122 = vld [vmem:[#allocation8] sm:$0xff]
    %v123 = vld [vmem:[#allocation8 + $0x8] sm:$0xff]
    %v124 = vld [vmem:[#allocation8 + $0x10] sm:$0xff]
    %v125 = vld [vmem:[#allocation8 + $0x18] sm:$0xff]
    %v126 = vld [vmem:[#allocation8 + $0x20] sm:$0xff]
    %v127 = vld [vmem:[#allocation8 + $0x28] sm:$0xff]
    %v128 = vld [vmem:[#allocation8 + $0x30] sm:$0xff]
    %v129 = vld [vmem:[#allocation8 + $0x38] sm:$0xff]
    %v130 = vld [vmem:[#allocation8 + $0x40] sm:$0xff]
    %v131 = vld [vmem:[#allocation8 + $0x48] sm:$0xff]
    %v132 = vld [vmem:[#allocation8 + $0x50] sm:$0xff]
    %v133 = vld [vmem:[#allocation8 + $0x58] sm:$0xff]
    %v134 = vld [vmem:[#allocation8 + $0x60] sm:$0xff]
    %v135 = vld [vmem:[#allocation8 + $0x68] sm:$0xff]
    %v136 = vld [vmem:[#allocation8 + $0x70] sm:$0xff]
    %v137 = vld [vmem:[#allocation8 + $0x78] sm:$0xff]
    %v138 = vld [vmem:[#allocation8 + $0x80] sm:$0xff]
    %v139 = vld [vmem:[#allocation8 + $0x88] sm:$0xff]
    %v140 = vld [vmem:[#allocation8 + $0x90] sm:$0xff]
    %v141 = vld [vmem:[#allocation8 + $0x98] sm:$0xff]
    %v142 = vld [vmem:[#allocation8 + $0xa0] sm:$0xff]
    %v143 = vld [vmem:[#allocation8 + $0xa8] sm:$0xff]
    %v144 = vld [vmem:[#allocation8 + $0xb0] sm:$0xff]
    %v145 = vld [vmem:[#allocation8 + $0xb8] sm:$0xff]
    %v146 = vld [vmem:[#allocation8 + $0xc0] sm:$0xff]
    %v147 = vld [vmem:[#allocation8 + $0xc8] sm:$0xff]
    %v148 = vld [vmem:[#allocation8 + $0xd0] sm:$0xff]
    %v149 = vld [vmem:[#allocation8 + $0xd8] sm:$0xff]
    %v150 = vld [vmem:[#allocation8 + $0xe0] sm:$0xff]
    %v151 = vld [vmem:[#allocation8 + $0xe8] sm:$0xff]
    %v152 = vld [vmem:[#allocation8 + $0xf0] sm:$0xff]
    %v153 = vld [vmem:[#allocation8 + $0xf8] sm:$0xff]
    %v154 = vld [vmem:[#allocation8 + $0x100] sm:$0xff]
    %v155 = vld [vmem:[#allocation8 + $0x108] sm:$0xff]
    %v156 = vld [vmem:[#allocation8 + $0x110] sm:$0xff]
    %v157 = vld [vmem:[#allocation8 + $0x118] sm:$0xff]
    %v158 = vld [vmem:[#allocation8 + $0x120] sm:$0xff]
    %v159 = vld [vmem:[#allocation8 + $0x128] sm:$0xff]
    %v160 = vld [vmem:[#allocation8 + $0x130] sm:$0xff]
    %v161 = vld [vmem:[#allocation8 + $0x138] sm:$0xff]
    %v162 = vld [vmem:[#allocation8 + $0x140] sm:$0xff]
    %v163 = vld [vmem:[#allocation8 + $0x148] sm:$0xff]
    %v164 = vld [vmem:[#allocation8 + $0x150] sm:$0xff]
    %v165 = vld [vmem:[#allocation8 + $0x158] sm:$0xff]
    %v166 = vld [vmem:[#allocation8 + $0x160] sm:$0xff]
    %v167 = vld [vmem:[#allocation8 + $0x168] sm:$0xff]
    %v168 = vld [vmem:[#allocation8 + $0x170] sm:$0xff]
    %v169 = vld [vmem:[#allocation8 + $0x178] sm:$0xff]
    %v170 = vld [vmem:[%s4] sm:$0x7]
    %v172 = vperm.slane %v170, 0
    %v173 = vperm.slane %v170, 1
    %v174 = vperm.slane %v170, 2
    %178 = vmatpush.msra.mxu0 %v167
    %179 = vmatpush.msra.mxu0 %v164
    %180 = vmatpush.msra.mxu0 %v161
    %181 = vmatpush.msra.mxu0 %v158
    %182 = vmatpush.msra.mxu0 %v155
    %183 = vmatpush.msra.mxu0 %v152
    %184 = vmatpush.msra.mxu0 %v149
    %185 = vmatpush.msra.mxu0 %v146
    %186 = vmatpush.msra.mxu0 %v143
    %187 = vmatpush.msra.mxu0 %v140
    %188 = vmatpush.msra.mxu0 %v137
    %189 = vmatpush.msra.mxu0 %v134
    %190 = vmatpush.msra.mxu0 %v131
    %191 = vmatpush.msra.mxu0 %v128
    %192 = vmatpush.msra.mxu0 %v125
    %193 = vmatpush.msra.mxu0 %v122
    %194 = vmatmul.f32.gmra.mxu0 %v114
    %v195 = vpop.f32.mrf.mxu0
    %v196 = vadd.f32 %v172, %v195
    %197 = vmatmul.f32.gmra.mxu0 %v115
    %v198 = vpop.f32.mrf.mxu0
    %v199 = vadd.f32 %v172, %v198
    %200 = vmatmul.f32.gmra.mxu0 %v116
    %v201 = vpop.f32.mrf.mxu0
    %v202 = vadd.f32 %v172, %v201
    %203 = vmatmul.f32.gmra.mxu0 %v117
    %v204 = vpop.f32.mrf.mxu0
    %v205 = vadd.f32 %v172, %v204
    %206 = vmatmul.f32.gmra.mxu0 %v118
    %v207 = vpop.f32.mrf.mxu0
    %v208 = vadd.f32 %v172, %v207
    %209 = vmatmul.f32.gmra.mxu0 %v119
    %v210 = vpop.f32.mrf.mxu0
    %v211 = vadd.f32 %v172, %v210
    %212 = vmatmul.f32.gmra.mxu0 %v120
    %v213 = vpop.f32.mrf.mxu0
    %v214 = vadd.f32 %v172, %v213
    %215 = vmatmul.f32.gmra.mxu0 %v121
    %v216 = vpop.f32.mrf.mxu0
    %v217 = vadd.f32 %v172, %v216
    %218 = vdwg.mxu0
    %219 = vmatpush.msra.mxu0 %v168
    %220 = vmatpush.msra.mxu0 %v165
    %221 = vmatpush.msra.mxu0 %v162
    %222 = vmatpush.msra.mxu0 %v159
    %223 = vmatpush.msra.mxu0 %v156
    %224 = vmatpush.msra.mxu0 %v153
    %225 = vmatpush.msra.mxu0 %v150
    %226 = vmatpush.msra.mxu0 %v147
    %227 = vmatpush.msra.mxu0 %v144
    %228 = vmatpush.msra.mxu0 %v141
    %229 = vmatpush.msra.mxu0 %v138
    %230 = vmatpush.msra.mxu0 %v135
    %231 = vmatpush.msra.mxu0 %v132
    %232 = vmatpush.msra.mxu0 %v129
    %233 = vmatpush.msra.mxu0 %v126
    %234 = vmatpush.msra.mxu0 %v123
    %235 = vmatmul.f32.gmra.mxu0 %v114
    %v236 = vpop.f32.mrf.mxu0
    %v237 = vadd.f32 %v173, %v236
    %238 = vmatmul.f32.gmra.mxu0 %v115
    %v239 = vpop.f32.mrf.mxu0
    %v240 = vadd.f32 %v173, %v239
    %241 = vmatmul.f32.gmra.mxu0 %v116
    %v242 = vpop.f32.mrf.mxu0
    %v243 = vadd.f32 %v173, %v242
    %244 = vmatmul.f32.gmra.mxu0 %v117
    %v245 = vpop.f32.mrf.mxu0
    %v246 = vadd.f32 %v173, %v245
    %247 = vmatmul.f32.gmra.mxu0 %v118
    %v248 = vpop.f32.mrf.mxu0
    %v249 = vadd.f32 %v173, %v248
    %250 = vmatmul.f32.gmra.mxu0 %v119
    %v251 = vpop.f32.mrf.mxu0
    %v252 = vadd.f32 %v173, %v251
    %253 = vmatmul.f32.gmra.mxu0 %v120
    %v254 = vpop.f32.mrf.mxu0
    %v255 = vadd.f32 %v173, %v254
    %256 = vmatmul.f32.gmra.mxu0 %v121
    %v257 = vpop.f32.mrf.mxu0
    %v258 = vadd.f32 %v173, %v257
    %259 = vdwg.mxu0
    %260 = vmatpush.msra.mxu0 %v169
    %261 = vmatpush.msra.mxu0 %v166
    %262 = vmatpush.msra.mxu0 %v163
    %263 = vmatpush.msra.mxu0 %v160
    %264 = vmatpush.msra.mxu0 %v157
    %265 = vmatpush.msra.mxu0 %v154
    %266 = vmatpush.msra.mxu0 %v151
    %267 = vmatpush.msra.mxu0 %v148
    %268 = vmatpush.msra.mxu0 %v145
    %269 = vmatpush.msra.mxu0 %v142
    %270 = vmatpush.msra.mxu0 %v139
    %271 = vmatpush.msra.mxu0 %v136
    %272 = vmatpush.msra.mxu0 %v133
    %273 = vmatpush.msra.mxu0 %v130
    %274 = vmatpush.msra.mxu0 %v127
    %275 = vmatpush.msra.mxu0 %v124
    %276 = vmatmul.f32.gmra.mxu0 %v114
    %v277 = vpop.f32.mrf.mxu0
    %v278 = vadd.f32 %v174, %v277
    %279 = vmatmul.f32.gmra.mxu0 %v115
    %v280 = vpop.f32.mrf.mxu0
    %v281 = vadd.f32 %v174, %v280
    %282 = vmatmul.f32.gmra.mxu0 %v116
    %v283 = vpop.f32.mrf.mxu0
    %v284 = vadd.f32 %v174, %v283
    %285 = vmatmul.f32.gmra.mxu0 %v117
    %v286 = vpop.f32.mrf.mxu0
    %v287 = vadd.f32 %v174, %v286
    %288 = vmatmul.f32.gmra.mxu0 %v118
    %v289 = vpop.f32.mrf.mxu0
    %v290 = vadd.f32 %v174, %v289
    %291 = vmatmul.f32.gmra.mxu0 %v119
    %v292 = vpop.f32.mrf.mxu0
    %v293 = vadd.f32 %v174, %v292
    %294 = vmatmul.f32.gmra.mxu0 %v120
    %v295 = vpop.f32.mrf.mxu0
    %v296 = vadd.f32 %v174, %v295
    %297 = vmatmul.f32.gmra.mxu0 %v121
    %v298 = vpop.f32.mrf.mxu0
    %v299 = vadd.f32 %v174, %v298
    %300 = vdwg.mxu0
    %301 = vst [vmem:[#allocation2] sm:$0xff] %v196
    %302 = vst [vmem:[#allocation2 + $0x8] sm:$0xff] %v237
    %303 = vst [vmem:[#allocation2 + $0x10] sm:$0xff] %v278
    %304 = vst [vmem:[#allocation2 + $0x18] sm:$0xff] %v199
    %305 = vst [vmem:[#allocation2 + $0x20] sm:$0xff] %v240
    %306 = vst [vmem:[#allocation2 + $0x28] sm:$0xff] %v281
    %307 = vst [vmem:[#allocation2 + $0x30] sm:$0xff] %v202
    %308 = vst [vmem:[#allocation2 + $0x38] sm:$0xff] %v243
    %309 = vst [vmem:[#allocation2 + $0x40] sm:$0xff] %v284
    %310 = vst [vmem:[#allocation2 + $0x48] sm:$0xff] %v205
    %311 = vst [vmem:[#allocation2 + $0x50] sm:$0xff] %v246
    %312 = vst [vmem:[#allocation2 + $0x58] sm:$0xff] %v287
    %313 = vst [vmem:[#allocation2 + $0x60] sm:$0xff] %v208
    %314 = vst [vmem:[#allocation2 + $0x68] sm:$0xff] %v249
    %315 = vst [vmem:[#allocation2 + $0x70] sm:$0xff] %v290
    %316 = vst [vmem:[#allocation2 + $0x78] sm:$0xff] %v211
    %317 = vst [vmem:[#allocation2 + $0x80] sm:$0xff] %v252
    %318 = vst [vmem:[#allocation2 + $0x88] sm:$0xff] %v293
    %319 = vst [vmem:[#allocation2 + $0x90] sm:$0xff] %v214
    %320 = vst [vmem:[#allocation2 + $0x98] sm:$0xff] %v255
    %321 = vst [vmem:[#allocation2 + $0xa0] sm:$0xff] %v296
    %322 = vst [vmem:[#allocation2 + $0xa8] sm:$0xff] %v217
    %323 = vst [vmem:[#allocation2 + $0xb0] sm:$0xff] %v258
    %324 = vst [vmem:[#allocation2 + $0xb8] sm:$0xff] %v299
    %v325 = vld [vmem:[#allocation10] sm:$0xff]
    %v326 = vld [vmem:[#allocation10 + $0x8] sm:$0xff]
    %v327 = vld [vmem:[#allocation10 + $0x10] sm:$0xff]
    %v328 = vld [vmem:[#allocation10 + $0x18] sm:$0xff]
    %v329 = vld [vmem:[#allocation10 + $0x20] sm:$0xff]
    %v330 = vld [vmem:[#allocation10 + $0x28] sm:$0xff]
    %v331 = vld [vmem:[#allocation10 + $0x30] sm:$0xff]
    %v332 = vld [vmem:[#allocation10 + $0x38] sm:$0xff]
    %v333 = vld [vmem:[#allocation10 + $0x40] sm:$0xff]
    %v334 = vld [vmem:[#allocation10 + $0x48] sm:$0xff]
    %v335 = vld [vmem:[#allocation10 + $0x50] sm:$0xff]
    %v336 = vld [vmem:[#allocation10 + $0x58] sm:$0xff]
    %v337 = vld [vmem:[#allocation10 + $0x60] sm:$0xff]
    %v338 = vld [vmem:[#allocation10 + $0x68] sm:$0xff]
    %v339 = vld [vmem:[#allocation10 + $0x70] sm:$0xff]
    %v340 = vld [vmem:[#allocation10 + $0x78] sm:$0xff]
    %v341 = vld [vmem:[#allocation10 + $0x80] sm:$0xff]
    %v342 = vld [vmem:[#allocation10 + $0x88] sm:$0xff]
    %v343 = vld [vmem:[#allocation10 + $0x90] sm:$0xff]
    %v344 = vld [vmem:[#allocation10 + $0x98] sm:$0xff]
    %v345 = vld [vmem:[#allocation10 + $0xa0] sm:$0xff]
    %v346 = vld [vmem:[#allocation10 + $0xa8] sm:$0xff]
    %v347 = vld [vmem:[#allocation10 + $0xb0] sm:$0xff]
    %v348 = vld [vmem:[#allocation10 + $0xb8] sm:$0xff]
    %v349 = vld [vmem:[#allocation10 + $0xc0] sm:$0xff]
    %v350 = vld [vmem:[#allocation10 + $0xc8] sm:$0xff]
    %v351 = vld [vmem:[#allocation10 + $0xd0] sm:$0xff]
    %v352 = vld [vmem:[#allocation10 + $0xd8] sm:$0xff]
    %v353 = vld [vmem:[#allocation10 + $0xe0] sm:$0xff]
    %v354 = vld [vmem:[#allocation10 + $0xe8] sm:$0xff]
    %v355 = vld [vmem:[#allocation10 + $0xf0] sm:$0xff]
    %v356 = vld [vmem:[#allocation10 + $0xf8] sm:$0xff]
    %v357 = vld [vmem:[#allocation10 + $0x100] sm:$0xff]
    %v358 = vld [vmem:[#allocation10 + $0x108] sm:$0xff]
    %v359 = vld [vmem:[#allocation10 + $0x110] sm:$0xff]
    %v360 = vld [vmem:[#allocation10 + $0x118] sm:$0xff]
    %v361 = vld [vmem:[#allocation10 + $0x120] sm:$0xff]
    %v362 = vld [vmem:[#allocation10 + $0x128] sm:$0xff]
    %v363 = vld [vmem:[#allocation10 + $0x130] sm:$0xff]
    %v364 = vld [vmem:[#allocation10 + $0x138] sm:$0xff]
    %v365 = vld [vmem:[#allocation10 + $0x140] sm:$0xff]
    %v366 = vld [vmem:[#allocation10 + $0x148] sm:$0xff]
    %v367 = vld [vmem:[#allocation10 + $0x150] sm:$0xff]
    %v368 = vld [vmem:[#allocation10 + $0x158] sm:$0xff]
    %v369 = vld [vmem:[#allocation10 + $0x160] sm:$0xff]
    %v370 = vld [vmem:[#allocation10 + $0x168] sm:$0xff]
    %v371 = vld [vmem:[#allocation10 + $0x170] sm:$0xff]
    %v372 = vld [vmem:[#allocation10 + $0x178] sm:$0xff]
    %v373 = vld [vmem:[%s1] sm:$0xff]
    %v374 = vld [vmem:[%s6] sm:$0x1]
    %v376 = vperm.slane %v374, 0
    // While loop
    $region58: #{tpu_custom_call.1} parent=1 // loop_pre_header
      _
    $region59: #{tpu_custom_call.1} parent=1 // loop_header
      %s379 = sphi 0, %s381
      %p380 = scmp.ge.s32.totalorder %s379, %s113
      %v384 = vphi 0.0, %v511
      %v385 = vphi 0.0, %v512
      %v386 = vphi -inf, %v513
    $region60: #{tpu_custom_call.1} parent=1 // loop_header_branch
      %383 = sbr.rel (%p380) target = $region64
    $region61: #{tpu_custom_call.1} parent=1 // loop_body
      %s387 = smul.u32 %s379, 8
      %s388 = sshra.s32 %s387, 3
      %s389 = sand.u32 %s387, 7
      %s390 = smul.u32 %s388, 3
      %s391 = smul.addr %s390, 8
      %s392 = scalar_lea.vmem [#allocation2], %s391
      %v393 = vld [vmem:[%s392] sm:$0xff]
      %v394 = vld [vmem:[%s392 + $0x8] sm:$0xff]
      %v395 = vld [vmem:[%s392 + $0x10] sm:$0xff]
      %396 = vmatpush.msra.mxu0 %v370
      %397 = vmatpush.msra.mxu0 %v367
      %398 = vmatpush.msra.mxu0 %v364
      %399 = vmatpush.msra.mxu0 %v361
      %400 = vmatpush.msra.mxu0 %v358
      %401 = vmatpush.msra.mxu0 %v355
      %402 = vmatpush.msra.mxu0 %v352
      %403 = vmatpush.msra.mxu0 %v349
      %404 = vmatpush.msra.mxu0 %v346
      %405 = vmatpush.msra.mxu0 %v343
      %406 = vmatpush.msra.mxu0 %v340
      %407 = vmatpush.msra.mxu0 %v337
      %408 = vmatpush.msra.mxu0 %v334
      %409 = vmatpush.msra.mxu0 %v331
      %410 = vmatpush.msra.mxu0 %v328
      %411 = vmatpush.msra.mxu0 %v325
      %412 = vmatmul.f32.gmra.mxu0 %v384
      %v413 = vpop.f32.mrf.mxu0
      %v414 = vadd.f32 0.0, %v413
      %415 = vdwg.mxu0
      %416 = vmatpush.msra.mxu0 %v371
      %417 = vmatpush.msra.mxu0 %v368
      %418 = vmatpush.msra.mxu0 %v365
      %419 = vmatpush.msra.mxu0 %v362
      %420 = vmatpush.msra.mxu0 %v359
      %421 = vmatpush.msra.mxu0 %v356
      %422 = vmatpush.msra.mxu0 %v353
      %423 = vmatpush.msra.mxu0 %v350
      %424 = vmatpush.msra.mxu0 %v347
      %425 = vmatpush.msra.mxu0 %v344
      %426 = vmatpush.msra.mxu0 %v341
      %427 = vmatpush.msra.mxu0 %v338
      %428 = vmatpush.msra.mxu0 %v335
      %429 = vmatpush.msra.mxu0 %v332
      %430 = vmatpush.msra.mxu0 %v329
      %431 = vmatpush.msra.mxu0 %v326
      %432 = vmatmul.f32.gmra.mxu0 %v384
      %v433 = vpop.f32.mrf.mxu0
      %v434 = vadd.f32 0.0, %v433
      %435 = vdwg.mxu0
      %436 = vmatpush.msra.mxu0 %v372
      %437 = vmatpush.msra.mxu0 %v369
      %438 = vmatpush.msra.mxu0 %v366
      %439 = vmatpush.msra.mxu0 %v363
      %440 = vmatpush.msra.mxu0 %v360
      %441 = vmatpush.msra.mxu0 %v357
      %442 = vmatpush.msra.mxu0 %v354
      %443 = vmatpush.msra.mxu0 %v351
      %444 = vmatpush.msra.mxu0 %v348
      %445 = vmatpush.msra.mxu0 %v345
      %446 = vmatpush.msra.mxu0 %v342
      %447 = vmatpush.msra.mxu0 %v339
      %448 = vmatpush.msra.mxu0 %v336
      %449 = vmatpush.msra.mxu0 %v333
      %450 = vmatpush.msra.mxu0 %v330
      %451 = vmatpush.msra.mxu0 %v327
      %452 = vmatmul.f32.gmra.mxu0 %v384
      %v453 = vpop.f32.mrf.mxu0
      %v454 = vadd.f32 0.0, %v453
      %455 = vdwg.mxu0
      %v456 = vadd.f32 %v393, %v414
      %v457 = vxor.u32 %v456, 2147483648
      %v458 = vmul.f32 %v457, 1.442695
      %v459 = vpow.pop %v458
      %v460 = vadd.f32 %v459, 1.0
      %v461 = vrcp.pop %v460
      %v462 = vmul.f32 %v460, %v461
      %v463 = vsub.f32 1.0, %v462
      %v464 = vmul.f32 %v461, %v463
      %v465 = vadd.f32 %v461, %v464
      %vm466 = vweird.f32 %v460
      %vm467 = vweird.f32 %v461
      %vm468 = vmor %vm466, %vm467
      %v469 = vsel %vm468, %v461, %v465
      %v470 = vand.u32 2147483647, %v460
      %vm471 = vcmp.eq.f32.partialorder %v470, 8.507059e+37
      %v472 = vand.u32 %v460, 2147483648
      %v473 = vor.u32 1.1754944e-38, %v472
      %v474 = vsel %vm471, %v473, %v469
      %v475 = vmul.f32 1.0, %v474
      %v476 = vadd.f32 %v394, %v434
      %v477 = vxor.u32 %v476, 2147483648
      %v478 = vmul.f32 %v477, 1.442695
      %v479 = vpow.pop %v478
      %v480 = vadd.f32 %v479, 1.0
      %v481 = vrcp.pop %v480
      %v482 = vmul.f32 %v480, %v481
      %v483 = vsub.f32 1.0, %v482
      %v484 = vmul.f32 %v481, %v483
      %v485 = vadd.f32 %v481, %v484
      %vm486 = vweird.f32 %v480
      %vm487 = vweird.f32 %v481
      %vm488 = vmor %vm486, %vm487
      %v489 = vsel %vm488, %v481, %v485
      %v490 = vand.u32 2147483647, %v480
      %vm491 = vcmp.eq.f32.partialorder %v490, 8.507059e+37
      %v492 = vand.u32 %v480, 2147483648
      %v493 = vor.u32 1.1754944e-38, %v492
      %v494 = vsel %vm491, %v493, %v489
      %v495 = vmul.f32 1.0, %v494
      %v496 = vadd.f32 %v454, %v376
      %v497 = vmul.f32 %v475, %v496
      %v498 = vadd.f32 %v395, %v497
      %v499 = vtanh.pop %v498
      %v500 = vsub.f32 %v384, %v499
      %v501 = vmul.f32 %v495, %v500
      %v502 = vadd.f32 %v499, %v501
      %v503 = vstv %s379
      %vm504 = vcmp.lt.s32.totalorder %v503, %v373
      %v505 = vsel %vm504, 1, 0
      %506 = vset.pattern.permute.xlu0 0
      %507 = vperm.xlu0 %506, %v505
      %v508 = vpop.permute.xlu0 %507
      %vm509 = vcmp.eq.s32.totalorder %v508, 1
      %v510 = vsel %vm509, %v502, 0.0
      %v511 = vsel %vm509, %v502, %v384
      %v512 = vadd.f32 %v385, %v510
      %v513 = vmax.f32 %v386, %v510
    $region62: #{tpu_custom_call.1} parent=1 // loop_footer
      %s381 = sadd.s32 %s379, 1
    $region63: #{tpu_custom_call.1} parent=1 // loop_footer_branch
      %378 = sbr.rel target = $region59
    $region64: #{tpu_custom_call.1} parent=1 // loop_exit
      _
    %p514 = scmp.gt.s32.totalorder %s113, 1
    %s515 = scalar_select %p514, %s113, 1
    %s516 = scvt.s32.f32 %s515
    %v517 = vstv %s516
    %v518 = vrcp.pop %v517
    %v519 = vmul.f32 %v517, %v518
    %v520 = vsub.f32 1.0, %v519
    %v521 = vmul.f32 %v518, %v520
    %v522 = vadd.f32 %v518, %v521
    %vm523 = vweird.f32 %v517
    %vm524 = vweird.f32 %v518
    %vm525 = vmor %vm523, %vm524
    %v526 = vsel %vm525, %v518, %v522
    %v527 = vand.u32 2147483647, %v517
    %vm528 = vcmp.eq.f32.partialorder %v527, 8.507059e+37
    %v529 = vand.u32 %v517, 2147483648
    %v530 = vor.u32 1.1754944e-38, %v529
    %v531 = vsel %vm528, %v530, %v526
    %s532 = vtos %v531
    %v533 = vstv %s532
    %v534 = vmul.f32 %v385, %v533
    %v535 = vld [vmem:[#allocation11] sm:$0xff]
    %v536 = vld [vmem:[#allocation11 + $0x8] sm:$0xff]
    %v537 = vld [vmem:[#allocation11 + $0x10] sm:$0xff]
    %v538 = vld [vmem:[#allocation11 + $0x18] sm:$0xff]
    %v539 = vld [vmem:[#allocation11 + $0x20] sm:$0xff]
    %v540 = vld [vmem:[#allocation11 + $0x28] sm:$0xff]
    %v541 = vld [vmem:[#allocation11 + $0x30] sm:$0xff]
    %v542 = vld [vmem:[#allocation11 + $0x38] sm:$0xff]
    %v543 = vld [vmem:[#allocation11 + $0x40] sm:$0xff]
    %v544 = vld [vmem:[#allocation11 + $0x48] sm:$0xff]
    %v545 = vld [vmem:[#allocation11 + $0x50] sm:$0xff]
    %v546 = vld [vmem:[#allocation11 + $0x58] sm:$0xff]
    %v547 = vld [vmem:[#allocation11 + $0x60] sm:$0xff]
    %v548 = vld [vmem:[#allocation11 + $0x68] sm:$0xff]
    %v549 = vld [vmem:[#allocation11 + $0x70] sm:$0xff]
    %v550 = vld [vmem:[#allocation11 + $0x78] sm:$0xff]
    %v551 = vld [vmem:[#allocation13] sm:$0xff]
    %v552 = vld [vmem:[#allocation13 + $0x8] sm:$0xff]
    %v553 = vld [vmem:[#allocation13 + $0x10] sm:$0xff]
    %v554 = vld [vmem:[#allocation13 + $0x18] sm:$0xff]
    %v555 = vld [vmem:[#allocation13 + $0x20] sm:$0xff]
    %v556 = vld [vmem:[#allocation13 + $0x28] sm:$0xff]
    %v557 = vld [vmem:[#allocation13 + $0x30] sm:$0xff]
    %v558 = vld [vmem:[#allocation13 + $0x38] sm:$0xff]
    %v559 = vld [vmem:[#allocation13 + $0x40] sm:$0xff]
    %v560 = vld [vmem:[#allocation13 + $0x48] sm:$0xff]
    %v561 = vld [vmem:[#allocation13 + $0x50] sm:$0xff]
    %v562 = vld [vmem:[#allocation13 + $0x58] sm:$0xff]
    %v563 = vld [vmem:[#allocation13 + $0x60] sm:$0xff]
    %v564 = vld [vmem:[#allocation13 + $0x68] sm:$0xff]
    %v565 = vld [vmem:[#allocation13 + $0x70] sm:$0xff]
    %v566 = vld [vmem:[#allocation13 + $0x78] sm:$0xff]
    %567 = vmatpush.msra.mxu0 %v566
    %568 = vmatpush.msra.mxu0 %v565
    %569 = vmatpush.msra.mxu0 %v564
    %570 = vmatpush.msra.mxu0 %v563
    %571 = vmatpush.msra.mxu0 %v562
    %572 = vmatpush.msra.mxu0 %v561
    %573 = vmatpush.msra.mxu0 %v560
    %574 = vmatpush.msra.mxu0 %v559
    %575 = vmatpush.msra.mxu0 %v558
    %576 = vmatpush.msra.mxu0 %v557
    %577 = vmatpush.msra.mxu0 %v556
    %578 = vmatpush.msra.mxu0 %v555
    %579 = vmatpush.msra.mxu0 %v554
    %580 = vmatpush.msra.mxu0 %v553
    %581 = vmatpush.msra.mxu0 %v552
    %582 = vmatpush.msra.mxu0 %v551
    %583 = vmatmul.f32.gmra.mxu0 %v386
    %v584 = vpop.f32.mrf.mxu0
    %v585 = vadd.f32 0.0, %v584
    %586 = vdwg.mxu0
    %587 = vmatpush.msra.mxu0 %v550
    %588 = vmatpush.msra.mxu0 %v549
    %589 = vmatpush.msra.mxu0 %v548
    %590 = vmatpush.msra.mxu0 %v547
    %591 = vmatpush.msra.mxu0 %v546
    %592 = vmatpush.msra.mxu0 %v545
    %593 = vmatpush.msra.mxu0 %v544
    %594 = vmatpush.msra.mxu0 %v543
    %595 = vmatpush.msra.mxu0 %v542
    %596 = vmatpush.msra.mxu0 %v541
    %597 = vmatpush.msra.mxu0 %v540
    %598 = vmatpush.msra.mxu0 %v539
    %599 = vmatpush.msra.mxu0 %v538
    %600 = vmatpush.msra.mxu0 %v537
    %601 = vmatpush.msra.mxu0 %v536
    %602 = vmatpush.msra.mxu0 %v535
    %603 = vmatmul.f32.gmra.mxu0 %v534
    %v604 = vpop.f32.mrf.mxu0
    %v605 = vadd.f32 %v585, %v604
    %606 = vdwg.mxu0
    %v607 = vld [vmem:[%s9] sm:$0x1]
    %v609 = vperm.slane %v607, 0
    %v611 = vadd.f32 %v605, %v609
    %612 = vmax.xlane.f32.xlu0 %v611
    %v613 = vpop.xlane.xlu0 %612
    %v614 = vsub.f32 %v611, %v613
    %v615 = vmul.f32 %v614, 1.442695
    %v616 = vpow.pop %v615
    %617 = vadd.xlane.f32.xlu0 %v616
    %v618 = vpop.xlane.xlu0 %617
    %v619 = vlog2.pop %v618
    %v620 = vmul.f32 %v619, 0.6931472
    %v621 = vsub.f32 %v614, %v620
    %622 = vst [vmem:[#allocation14] sm:$0xff] %v621
    // Predicated region
    $region65: #{tpu_custom_call.1} parent=1 // pred_check
      _
    $region66: #{tpu_custom_call.1} parent=1 // pred_check_branch
      %624 = sbr.rel (0) target = $region68
    $region67: #{tpu_custom_call.1} parent=1 // pred_region
      %626 = vsyncadd [#allocation7], 0
      %s628 = sshll.u32 [#allocation14], 4
      %s629 = int_to_ptr.vmem [resolvable:$true] %s628
      %s630 = sshll.u32 %s10, 4
      %s631 = int_to_ptr.hbm [resolvable:$true] %s630
      %633 = dma.vmem_to_hbm [thread:$0]  %s629, 128, %s631, [#allocation7]
    $region68: #{tpu_custom_call.1} parent=1 // pred_fallthru
      _
    // Predicated region
    $region69: #{tpu_custom_call.1} parent=1 // pred_check
      _
    $region70: #{tpu_custom_call.1} parent=1 // pred_check_branch
      %635 = sbr.rel (0) target = $region72
    $region71: #{tpu_custom_call.1} parent=1 // pred_region
      %637 = dma.done [#allocation7], 128
    $region72: #{tpu_custom_call.1} parent=1 // pred_fallthru
      _
    %638 = vsyncpa [#allocation6], 1
    %639 = vsyncpa [#allocation9], 1
    %640 = vsyncpa [#allocation12], 1
    %641 = vsyncpa [#allocation7], 1

</llo_original>
